<compile_context>
chip_gen: v6e
topology: v6e:2x2x1
jax: 0.10.0
libtpu: 0.0.40
codegen_flags: <defaults>
</compile_context>

<pallas_src>
import jax
import jax.numpy as jnp
from jax.experimental import pallas as pl
from jax.experimental.pallas import tpu as pltpu


def _round_up(n, m):
    return ((n + m - 1) // m) * m


def _classifier_kernel(x_ref, w_ref, b_ref, o_ref):
    # x_ref: (TB, C_IN) bf16   w_ref: (C_OUT, C_IN) bf16
    # b_ref: (C_OUT, 1) f32    o_ref: (C_OUT, TB)
    # NT matmul: contract the C_IN axis of both operands -> [C_OUT, TB]
    # (no physical transpose of x; the MXU consumes the transposed operand).
    acc = jax.lax.dot_general(
        w_ref[...], x_ref[...],
        dimension_numbers=(((1,), (1,)), ((), ())),
        preferred_element_type=jnp.float32,
    )
    o_ref[...] = (acc + b_ref[...]).astype(o_ref.dtype)


def domain_classifier_forward(x, weight_pt, bias, alpha=1.0, *, block_b=512,
                              compute_dtype=jnp.bfloat16):
    """Forward pass of DomainClassifier.

    x:         [B, C_IN]      activations
    weight_pt: [C_OUT, C_IN]  nn.Linear weight in PyTorch layout
    bias:      [C_OUT]
    alpha:     gradient-reversal strength; forward output is independent of it.
    """
    del alpha  # ReverseLayerF is the identity in the forward pass.
    B, C_IN = x.shape
    C_OUT = weight_pt.shape[0]
    out_dtype = x.dtype

    # ---- batch tiling: large tiles, zero-padded tail (no divisibility assert)
    b_pad8 = _round_up(max(B, 1), 8)
    if b_pad8 <= block_b:
        block_rows = b_pad8                  # single grid step; block == full dim
    else:
        block_rows = _round_up(block_b, 128)  # lane-dense output tile width
    grid_b = pl.cdiv(b_pad8, block_rows)
    b_pad = grid_b * block_rows

    x_p = x
    if b_pad != B:
        x_p = jnp.pad(x, ((0, b_pad - B), (0, 0)))

    # bf16 inputs halve HBM traffic; MXU accumulation + bias add stay f32.
    x_p = x_p.astype(compute_dtype)
    w = weight_pt.astype(compute_dtype)
    b2d = bias.astype(jnp.float32).reshape(C_OUT, 1)

    bytes_accessed = (
        x_p.size * x_p.dtype.itemsize
        + w.size * w.dtype.itemsize
        + b2d.size * b2d.dtype.itemsize
        + C_OUT * b_pad * jnp.dtype(out_dtype).itemsize
    )

    out_t = pl.pallas_call(
        _classifier_kernel,
        out_shape=jax.ShapeDtypeStruct((C_OUT, b_pad), out_dtype),
        grid_spec=pltpu.PrefetchScalarGridSpec(
            num_scalar_prefetch=0,
            grid=(grid_b,),
            in_specs=[
                # batch-tiled activations
                pl.BlockSpec((block_rows, C_IN), lambda i: (i, 0)),
                # grid-invariant weight / bias (constant index_map -> fetched once)
                pl.BlockSpec((C_OUT, C_IN), lambda i: (0, 0)),
                pl.BlockSpec((C_OUT, 1), lambda i: (0, 0)),
            ],
            # lane-dense output: the batch (multiple of 128 when tiled) lives on
            # the 128-lane axis.
            out_specs=pl.BlockSpec((C_OUT, block_rows), lambda i: (0, i)),
        ),
        compiler_params=pltpu.CompilerParams(
            dimension_semantics=("parallel",),
            vmem_limit_bytes=32 * 1024 * 1024,
        ),
        cost_estimate=pl.CostEstimate(
            flops=2 * b_pad * C_IN * C_OUT,
            transcendentals=0,
            bytes_accessed=bytes_accessed,
        ),
    )(x_p, w, b2d)

    # Undo the transposed layout and the batch padding in XLA (tiny: B x C_OUT).
    return out_t.T[:B]


def init_params(key, c_input_dims, c_output_dims):
    """init_bert_weights: Linear.weight ~ N(0, 0.02), Linear.bias = 0."""
    w_pt = 0.02 * jax.random.normal(
        key, (c_output_dims, c_input_dims), jnp.float32)
    bias = jnp.zeros((c_output_dims,), jnp.float32)
    return w_pt, bias


if __name__ == "__main__":
    key = jax.random.PRNGKey(0)
    k_x, k_w = jax.random.split(key)

    # Small shapes consistent with the module: batch=8, mp.c_input_dims=128,
    # mp.c_output_dims=8.
    B, C_IN, C_OUT = 8, 128, 8
    x = jax.random.normal(k_x, (B, C_IN), jnp.float32)
    alpha = 1.0

    weight_pt, bias = init_params(k_w, C_IN, C_OUT)

    out = domain_classifier_forward(x, weight_pt, bias, alpha)
    out = jax.block_until_ready(out)
    assert out.shape == (B, C_OUT)

    # Reference with the same bf16 input rounding and f32 accumulation
    # (dropout / grad-reversal are identities in forward).
    x_b = x.astype(jnp.bfloat16).astype(jnp.float32)
    w_b = weight_pt.astype(jnp.bfloat16).astype(jnp.float32)
    ref = x_b @ w_b.T + bias
    assert jnp.allclose(out, ref, atol=1e-3, rtol=1e-3), (
        float(jnp.max(jnp.abs(out - ref))))

    print("KERNEL_OK")
</pallas_src>

<mosaic_0001>
module attributes {stable_mosaic.version = 11 : i64} {
  func.func @_classifier_kernel(%arg0: i32, %arg1: memref<8x128xbf16, #tpu.memory_space<vmem>>, %arg2: memref<8x128xbf16, #tpu.memory_space<vmem>>, %arg3: memref<8x1xf32, #tpu.memory_space<vmem>>, %arg4: memref<8x8xf32, #tpu.memory_space<vmem>>) attributes {dimension_semantics = [#tpu.dimension_semantics<parallel>], iteration_bounds = array<i64: 1>, scalar_prefetch = 0 : i64, scratch_operands = 0 : i64, tpu.core_type = #tpu.core_type<tc>, window_params = [{transform_indices = @transform_0, window_bounds = array<i64: 8, 128>}, {pipeline_mode = #tpu.pipeline_mode<synchronous>, transform_indices = @transform_1, window_bounds = array<i64: 8, 128>}, {pipeline_mode = #tpu.pipeline_mode<synchronous>, transform_indices = @transform_2, window_bounds = array<i64: 8, 1>}, {transform_indices = @transform_3, window_bounds = array<i64: 8, 8>}]} {
    %c0 = arith.constant 0 : index
    %c0_0 = arith.constant 0 : index
    %0 = vector.load %arg2[%c0, %c0_0] : memref<8x128xbf16, #tpu.memory_space<vmem>>, vector<8x128xbf16>
    %c0_1 = arith.constant 0 : index
    %c0_2 = arith.constant 0 : index
    %1 = vector.load %arg1[%c0_1, %c0_2] : memref<8x128xbf16, #tpu.memory_space<vmem>>, vector<8x128xbf16>
    %cst = arith.constant dense<0.000000e+00> : vector<8x8xf32>
    %2 = tpu.matmul %0, %1, %cst {dimension_numbers = #tpu.dot_dimension_numbers<[1], [1], [0], [0], [0, 0, 1, 0], [], []>} : vector<8x128xbf16>, vector<8x128xbf16>, vector<8x8xf32> -> vector<8x8xf32>
    %c0_3 = arith.constant 0 : index
    %c0_4 = arith.constant 0 : index
    %3 = vector.load %arg3[%c0_3, %c0_4] : memref<8x1xf32, #tpu.memory_space<vmem>>, vector<8x1xf32>
    %4 = vector.broadcast %3 : vector<8x1xf32> to vector<8x8xf32>
    %5 = arith.addf %2, %4 : vector<8x8xf32>
    %c0_5 = arith.constant 0 : index
    %c0_6 = arith.constant 0 : index
    %6 = vector.load %arg4[%c0_5, %c0_6] : memref<8x8xf32, #tpu.memory_space<vmem>>, vector<8x8xf32>
    tpu.vector_store %arg4[%c0_5, %c0_6], %5 {strides = array<i32>} : memref<8x8xf32, #tpu.memory_space<vmem>>, vector<8x8xf32>,
    return
  }
  func.func @transform_0(%arg0: i32) -> (i32, i32) {
    %c0_i32 = arith.constant 0 : i32
    %c0_i32_0 = arith.constant 0 : i32
    return %arg0, %c0_i32 : i32, i32
  }
  func.func @transform_1(%arg0: i32) -> (i32, i32) {
    %c0_i32 = arith.constant 0 : i32
    %c0_i32_0 = arith.constant 0 : i32
    %c0_i32_1 = arith.constant 0 : i32
    return %c0_i32, %c0_i32_0 : i32, i32
  }
  func.func @transform_2(%arg0: i32) -> (i32, i32) {
    %c0_i32 = arith.constant 0 : i32
    %c0_i32_0 = arith.constant 0 : i32
    %c0_i32_1 = arith.constant 0 : i32
    return %c0_i32, %c0_i32_0 : i32, i32
  }
  func.func @transform_3(%arg0: i32) -> (i32, i32) {
    %c0_i32 = arith.constant 0 : i32
    %c0_i32_0 = arith.constant 0 : i32
    return %c0_i32, %arg0 : i32, i32
  }
}

</mosaic_0001>

<llo_original>
// kernel: tpu_custom_call.1
$region0: #{tpu_custom_call.1}
  #allocation0 [shape = 'u32[]', space=smem, size = 0x4, offset = 0x4, fixed_abs, tag = 'smem constant byte address 0x4 - core index']
  #allocation1 [shape = 'u32[144,128]{1,0:T(1,128)}', space=vmem, size = 0x12000, scoped, tag = 'internal scratch']
  %s0 = inlined_call_operand.vmem [shape: bf16[8,128], index: 0, kind: input, shape index: {}]
  %s1 = inlined_call_operand.vmem [shape: bf16[8,128], index: 1, kind: input, shape index: {}]
  %s2 = inlined_call_operand.vmem [shape: f32[8,1], index: 2, kind: input, shape index: {}]
  %s3 = inlined_call_operand.hbm [shape: f32[8,8], index: 3, kind: output, shape index: {}]
  %s4 = sld [smem:[#allocation0]]
  $region22: #{tpu_custom_call.1} parent=0
    _
  %s6 = ssub.s32 1, %s4
  %s7 = scalar_select 0, %s6, %s4
  $region1: #{tpu_custom_call.1} parent=0
    #allocation2 [shape = 'u8[4096]{0}', space=vmem, size = 0x1000, scoped, tag = 'output window, operand 0, single buffered']
    #allocation3 [shape = 's32[1]{0}', space=sflag, size = 0x4, scoped, tag = 'scoped memory for tpu_custom_call.1']
    %8 = vsyncpa [#allocation3], 0
    // Predicated region
    $region2: #{tpu_custom_call.1} parent=1 // pred_check
      _
    $region3: #{tpu_custom_call.1} parent=1 // pred_check_branch
      %10 = sbr.rel (0) target = $region5
    $region4: #{tpu_custom_call.1} parent=1 // pred_region
      _
    $region5: #{tpu_custom_call.1} parent=1 // pred_fallthru
      _
    // Predicated region
    $region6: #{tpu_custom_call.1} parent=1 // pred_check
      _
    $region7: #{tpu_custom_call.1} parent=1 // pred_check_branch
      %12 = sbr.rel (0) target = $region9
    $region8: #{tpu_custom_call.1} parent=1 // pred_region
      _
    $region9: #{tpu_custom_call.1} parent=1 // pred_fallthru
      _
    // Predicated region
    $region10: #{tpu_custom_call.1} parent=1 // pred_check
      _
    $region11: #{tpu_custom_call.1} parent=1 // pred_check_branch
      %14 = sbr.rel (0) target = $region13
    $region12: #{tpu_custom_call.1} parent=1 // pred_region
      _
    $region13: #{tpu_custom_call.1} parent=1 // pred_fallthru
      _
    %v16 = vld [vmem:[%s1] sm:$0xf]
    %v17 = vld [vmem:[%s0] sm:$0xf]
    %v18 = vld [vmem:[%s2] sm:$0xff]
    %20 = vset.pattern.permute.xlu0 0
    %21 = vperm.xlu0 %20, %v18
    %v22 = vpop.permute.xlu0 %21
    %24 = vmatprep.subr.bf16.mxu0 0
    %25 = vmatpush1.bf16.xpose.msra.mxu0 0
    %26 = vmatprep.subr.bf16.mxu0 0
    %27 = vmatpush1.bf16.xpose.msra.mxu0 0
    %28 = vmatprep.subr.bf16.mxu0 0
    %29 = vmatpush1.bf16.xpose.msra.mxu0 0
    %30 = vmatprep.subr.bf16.mxu0 0
    %31 = vmatpush1.bf16.xpose.msra.mxu0 0
    %32 = vmatprep.subr.bf16.mxu0 0
    %33 = vmatpush1.bf16.xpose.msra.mxu0 0
    %34 = vmatprep.subr.bf16.mxu0 0
    %35 = vmatpush1.bf16.xpose.msra.mxu0 0
    %36 = vmatprep.subr.bf16.mxu0 0
    %37 = vmatpush1.bf16.xpose.msra.mxu0 0
    %38 = vmatprep.subr.bf16.mxu0 0
    %39 = vmatpush1.bf16.xpose.msra.mxu0 %v17
    %40 = vmatprep.subr.bf16.mxu0 0
    %41 = vmatpush2.bf16.xpose.msra.mxu0 0
    %42 = vmatprep.subr.bf16.mxu0 0
    %43 = vmatpush2.bf16.xpose.msra.mxu0 0
    %44 = vmatprep.subr.bf16.mxu0 0
    %45 = vmatpush2.bf16.xpose.msra.mxu0 0
    %46 = vmatprep.subr.bf16.mxu0 0
    %47 = vmatpush2.bf16.xpose.msra.mxu0 0
    %48 = vmatprep.subr.bf16.mxu0 0
    %49 = vmatpush2.bf16.xpose.msra.mxu0 0
    %50 = vmatprep.subr.bf16.mxu0 0
    %51 = vmatpush2.bf16.xpose.msra.mxu0 0
    %52 = vmatprep.subr.bf16.mxu0 0
    %53 = vmatpush2.bf16.xpose.msra.mxu0 0
    %54 = vmatprep.subr.bf16.mxu0 0
    %55 = vmatpush2.bf16.xpose.msra.mxu0 0
    %56 = vmatprep.mubr.bf16.mxu0 0
    %57 = vmatmul.mubr.bf16.gmra.mxu0 %v16
    %v58 = vpop.f32.mrf.mxu0
    %v59 = vadd.f32 %v22, %v58
    %v60 = vpop.f32.mrf.mxu0
    %v61 = vpop.f32.mrf.mxu0
    %v62 = vpop.f32.mrf.mxu0
    %63 = vdwg.mxu0
    %vm64 = vcmask 64512
    %65 = vst.msk [vmem:[#allocation2] sm:$0xff] %vm64, %v59
    // Predicated region
    $region14: #{tpu_custom_call.1} parent=1 // pred_check
      _
    $region15: #{tpu_custom_call.1} parent=1 // pred_check_branch
      %67 = sbr.rel (0) target = $region17
    $region16: #{tpu_custom_call.1} parent=1 // pred_region
      %s69 = ssub.s32 128, 128
      %70 = vsyncadd [#allocation3], %s69
      %s72 = sshll.u32 [#allocation2], 4
      %s73 = int_to_ptr.vmem [resolvable:$true] %s72
      %75 = dma.vmem_to_hbm [thread:$0]  %s73, 128, %s3, [#allocation3]
    $region17: #{tpu_custom_call.1} parent=1 // pred_fallthru
      _
    // Predicated region
    $region18: #{tpu_custom_call.1} parent=1 // pred_check
      _
    $region19: #{tpu_custom_call.1} parent=1 // pred_check_branch
      %77 = sbr.rel (0) target = $region21
    $region20: #{tpu_custom_call.1} parent=1 // pred_region
      %78 = dma.done [#allocation3], 128
    $region21: #{tpu_custom_call.1} parent=1 // pred_fallthru
      _
    %79 = vsyncpa [#allocation3], 1

</llo_original>
